<compile_context>
chip_gen: v7x
topology: tpu7x:2x2x1
jax: 0.10.0
libtpu: 0.0.40
codegen_flags: <defaults>
</compile_context>

<pallas_src>
import jax
import jax.numpy as jnp
from jax.experimental import pallas as pl
from jax.experimental.pallas import tpu as pltpu


def _round_up(x, m):
    return ((x + m - 1) // m) * m


def _sublane(itemsize):
    if itemsize >= 4:
        return 8
    if itemsize == 2:
        return 16
    return 32


def _pick_chunk_t(T, D):
    """Rows of keys processed per energy/context chunk (static)."""
    tc = max(8, min(256, (32768 // max(D, 1)) // 8 * 8))
    return min(T, tc)


def _vmem_limit_bytes():
    """Generation-aware scoped-VMEM request (~50% of physical, capped)."""
    cap = 64 * 1024 * 1024            # conservative default (v7x per-TC)
    try:
        cap = int(pltpu.get_tpu_info().vmem_capacity_bytes)
    except Exception:
        pass
    return max(32 * 1024 * 1024, min(int(cap * 0.5), 64 * 1024 * 1024))


def _pick_block_batch(B, T, T_pad, D, itemsize, vmem_limit):
    """Batch rows per grid step, sized against a realistic VMEM budget."""
    sub = _sublane(itemsize)
    tc = _pick_chunk_t(T, D)

    # Bytes that do not scale with TB: double-buffered resident Ua weight,
    # bias/Va rows, plus a margin for compiler-internal scratch.
    fixed = 2 * D * D * itemsize + 4 * D * itemsize + 6 * 1024 * 1024
    avail = max(vmem_limit - fixed, 2 * 1024 * 1024)

    # Bytes per batch row at one grid step:
    #   keys input (double-buffered)                 2 * T * D * isz
    #   qp input (f32, double-buffered)              2 * D * 4
    #   ctx / w outputs (double-buffered)            2 * D * isz + 2 * T_pad * isz
    #   e scratch (f32)                              T_pad * 4
    #   f32 chunk temporaries (kp, tanh, h*va, w*k)  ~5 * tc * D * 4
    row = (2 * T * D * itemsize + 2 * D * 4 + 2 * D * itemsize
           + 2 * T_pad * itemsize + T_pad * 4 + 5 * tc * D * 4)
    tb_fit = max(sub, (avail // row) // sub * sub)

    # Keep >= ~4 grid steps when the batch allows it (megacore sharding on
    # v7x, pipelining everywhere); never exceed the sublane-padded batch.
    target_steps = 4
    tb_par = max(sub, ((B + target_steps - 1) // target_steps) // sub * sub)
    tb_cap = _round_up(B, sub)

    return max(sub, min(tb_fit, tb_par, tb_cap, 512))


def attention_kernel(qp_ref, k_ref, ua_ref, bu_ref, va_ref, ctx_ref, w_ref,
                     e_ref):
    tb, t, d = k_ref.shape
    t_pad = w_ref.shape[1]
    tc = _pick_chunk_t(t, d)

    qp = qp_ref[...]                                   # (TB, D) f32 (hoisted Wa proj)
    ua = ua_ref[...]                                   # (D, D)
    bu = bu_ref[...]                                   # (1, D)
    va = va_ref[...]                                   # (1, D)

    # Padded logit lanes -> -inf so the softmax ignores them.
    if t_pad > t:
        e_ref[...] = jnp.full((tb, t_pad), -jnp.inf, dtype=jnp.float32)

    # --- Pass 1: additive-attention energies, chunked over T ----------------
    # Static Python loop: per-chunk shapes are static and the remainder chunk
    # is just a smaller slab; each chunk's temporaries die at the e_ref store.
    for start in range(0, t, tc):
        cur = min(tc, t - start)
        kc = k_ref[:, start:start + cur, :]                       # (TB, cur, D)
        kp = jnp.dot(kc.reshape(tb * cur, d), ua,
                     preferred_element_type=jnp.float32) + bu     # (TB*cur, D)
        h = jnp.tanh(qp[:, None, :] + kp.reshape(tb, cur, d))     # (TB, cur, D)
        e_ref[:, start:start + cur] = jnp.sum(h * va, axis=-1)    # (TB, cur)

    # --- Softmax over T (lane axis), f32 -------------------------------------
    e = e_ref[...]                                                # (TB, T_pad)
    m = jnp.max(e, axis=-1, keepdims=True)
    p = jnp.exp(e - m)
    w = p / jnp.sum(p, axis=-1, keepdims=True)                    # (TB, T_pad)

    # --- Pass 2: context = sum_t w * keys, chunked over T --------------------
    ctx = jnp.zeros((tb, d), dtype=jnp.float32)
    for start in range(0, t, tc):
        cur = min(tc, t - start)
        kc = k_ref[:, start:start + cur, :].astype(jnp.float32)   # (TB, cur, D)
        wc = w[:, start:start + cur]                              # (TB, cur)
        ctx = ctx + jnp.sum(wc[:, :, None] * kc, axis=1)

    ctx_ref[...] = ctx.astype(ctx_ref.dtype)
    w_ref[...] = w.astype(w_ref.dtype)


def nn_attention(query, keys, wa, ba, ua, bu, va, bv):
    B, _, D = query.shape
    T = keys.shape[1]
    dtype = query.dtype
    itemsize = jnp.dtype(dtype).itemsize

    # Hoisted query projection: one full-batch GEMM; Wa/ba never enter VMEM.
    q2 = query.reshape(B, D)
    qp = (jnp.dot(q2, wa, preferred_element_type=jnp.float32)
          + ba.astype(jnp.float32))                               # (B, D) f32
    va_row = va.reshape(1, D)     # Va weight as a lane row for the VPU reduce
    del bv                        # softmax-invariant: outputs don't depend on it

    T_pad = _round_up(T, 128)     # lane-dense weights store
    vmem_limit = _vmem_limit_bytes()
    tb = _pick_block_batch(B, T, T_pad, D, itemsize, vmem_limit)

    b_pad = _round_up(B, tb)
    if b_pad != B:
        qp = jnp.pad(qp, ((0, b_pad - B), (0, 0)))
        keys_in = jnp.pad(keys, ((0, b_pad - B), (0, 0), (0, 0)))
    else:
        keys_in = keys

    grid = (b_pad // tb,)

    ctx2, w2 = pl.pallas_call(
        attention_kernel,
        out_shape=(
            jax.ShapeDtypeStruct((b_pad, D), dtype),       # context slab
            jax.ShapeDtypeStruct((b_pad, T_pad), dtype),   # weights slab (lane-padded)
        ),
        grid=grid,
        in_specs=[
            pl.BlockSpec((tb, D), lambda b: (b, 0)),        # qp rows (f32)
            pl.BlockSpec((tb, T, D), lambda b: (b, 0, 0)),  # keys
            pl.BlockSpec((D, D), lambda b: (0, 0)),         # Ua (resident)
            pl.BlockSpec((1, D), lambda b: (0, 0)),         # bu
            pl.BlockSpec((1, D), lambda b: (0, 0)),         # Va row
        ],
        out_specs=[
            pl.BlockSpec((tb, D), lambda b: (b, 0)),        # context
            pl.BlockSpec((tb, T_pad), lambda b: (b, 0)),    # weights
        ],
        scratch_shapes=[pltpu.VMEM((tb, T_pad), jnp.float32)],   # energies
        compiler_params=pltpu.CompilerParams(
            dimension_semantics=("parallel",),
            vmem_limit_bytes=vmem_limit,
        ),
    )(qp, keys_in, ua, bu, va_row)

    ctx = ctx2[:B].reshape(B, 1, D)
    w = w2[:B, :T].reshape(B, 1, T)
    return ctx, w


def reference(query, keys, wa, ba, ua, bu, va, bv):
    qp = query @ wa + ba                       # (B, 1, D)
    kp = keys @ ua + bu                        # (B, T, D)
    e = jnp.tanh(qp + kp) @ va + bv            # (B, T, 1)
    scores = jnp.swapaxes(e, 1, 2)             # (B, 1, T)
    w = jax.nn.softmax(scores, axis=-1)
    ctx = jnp.einsum('bqt,btd->bqd', w, keys)  # (B, 1, D)
    return ctx, w


if __name__ == "__main__":
    B, T, D = 2, 8, 32
    key = jax.random.PRNGKey(0)
    kq, kk, k1, k2, k3, k4, k5, k6 = jax.random.split(key, 8)

    query = jax.random.normal(kq, (B, 1, D), dtype=jnp.float32)
    keys = jax.random.normal(kk, (B, T, D), dtype=jnp.float32)

    # Parameters (nn.Linear(D, D) x2, nn.Linear(D, 1); weights stored (in, out)).
    wa = jax.random.normal(k1, (D, D), dtype=jnp.float32) * 0.1
    ba = jax.random.normal(k2, (1, D), dtype=jnp.float32) * 0.1
    ua = jax.random.normal(k3, (D, D), dtype=jnp.float32) * 0.1
    bu = jax.random.normal(k4, (1, D), dtype=jnp.float32) * 0.1
    va = jax.random.normal(k5, (D, 1), dtype=jnp.float32) * 0.1
    bv = jax.random.normal(k6, (1, 1), dtype=jnp.float32) * 0.1

    ctx, w = nn_attention(query, keys, wa, ba, ua, bu, va, bv)
    jax.block_until_ready((ctx, w))

    ctx_ref, w_ref = reference(query, keys, wa, ba, ua, bu, va, bv)
    assert ctx.shape == (B, 1, D) and w.shape == (B, 1, T)
    assert jnp.allclose(ctx, ctx_ref, atol=1e-5, rtol=1e-5)
    assert jnp.allclose(w, w_ref, atol=1e-5, rtol=1e-5)

    print("KERNEL_OK")
</pallas_src>

<mosaic_0001>
module attributes {stable_mosaic.version = 11 : i64} {
  func.func @attention_kernel(%arg0: i32, %arg1: memref<8x32xf32, #tpu.memory_space<vmem>>, %arg2: memref<8x8x32xf32, #tpu.memory_space<vmem>>, %arg3: memref<32x32xf32, #tpu.memory_space<vmem>>, %arg4: memref<1x32xf32, #tpu.memory_space<vmem>>, %arg5: memref<1x32xf32, #tpu.memory_space<vmem>>, %arg6: memref<8x32xf32, #tpu.memory_space<vmem>>, %arg7: memref<8x128xf32, #tpu.memory_space<vmem>>, %arg8: memref<8x128xf32, #tpu.memory_space<vmem>>) attributes {dimension_semantics = [#tpu.dimension_semantics<parallel>], iteration_bounds = array<i64: 1>, scalar_prefetch = 0 : i64, scratch_operands = 1 : i64, tpu.core_type = #tpu.core_type<tc>, window_params = [{transform_indices = @transform_0, window_bounds = array<i64: 8, 32>}, {transform_indices = @transform_1, window_bounds = array<i64: 8, 8, 32>}, {pipeline_mode = #tpu.pipeline_mode<synchronous>, transform_indices = @transform_2, window_bounds = array<i64: 32, 32>}, {pipeline_mode = #tpu.pipeline_mode<synchronous>, transform_indices = @transform_3, window_bounds = array<i64: 1, 32>}, {pipeline_mode = #tpu.pipeline_mode<synchronous>, transform_indices = @transform_4, window_bounds = array<i64: 1, 32>}, {transform_indices = @transform_5, window_bounds = array<i64: 8, 32>}, {transform_indices = @transform_6, window_bounds = array<i64: 8, 128>}]} {
    %c0 = arith.constant 0 : index
    %c0_0 = arith.constant 0 : index
    %0 = vector.load %arg1[%c0, %c0_0] : memref<8x32xf32, #tpu.memory_space<vmem>>, vector<8x32xf32>
    %c0_1 = arith.constant 0 : index
    %c0_2 = arith.constant 0 : index
    %1 = vector.load %arg3[%c0_1, %c0_2] : memref<32x32xf32, #tpu.memory_space<vmem>>, vector<32x32xf32>
    %c0_3 = arith.constant 0 : index
    %c0_4 = arith.constant 0 : index
    %2 = vector.load %arg4[%c0_3, %c0_4] : memref<1x32xf32, #tpu.memory_space<vmem>>, vector<1x32xf32>
    %c0_5 = arith.constant 0 : index
    %c0_6 = arith.constant 0 : index
    %3 = vector.load %arg5[%c0_5, %c0_6] : memref<1x32xf32, #tpu.memory_space<vmem>>, vector<1x32xf32>
    %cst = arith.constant 0xFF800000 : f32
    %4 = vector.broadcast %cst : f32 to vector<8x128xf32>
    %c0_7 = arith.constant 0 : index
    %c0_8 = arith.constant 0 : index
    %5 = vector.load %arg8[%c0_7, %c0_8] : memref<8x128xf32, #tpu.memory_space<vmem>>, vector<8x128xf32>
    tpu.vector_store %arg8[%c0_7, %c0_8], %4 {strides = array<i32>} : memref<8x128xf32, #tpu.memory_space<vmem>>, vector<8x128xf32>,
    %c0_9 = arith.constant 0 : index
    %c0_10 = arith.constant 0 : index
    %c0_11 = arith.constant 0 : index
    %6 = vector.load %arg2[%c0_9, %c0_10, %c0_11] : memref<8x8x32xf32, #tpu.memory_space<vmem>>, vector<8x8x32xf32>
    %7 = vector.shape_cast %6 : vector<8x8x32xf32> to vector<64x32xf32>
    %cst_12 = arith.constant dense<0.000000e+00> : vector<64x32xf32>
    %8 = tpu.matmul %7, %1, %cst_12 {dimension_numbers = #tpu.dot_dimension_numbers<[1], [0], [0], [1], [0, 0, 1, 1], [], []>} : vector<64x32xf32>, vector<32x32xf32>, vector<64x32xf32> -> vector<64x32xf32>
    %9 = vector.broadcast %2 : vector<1x32xf32> to vector<64x32xf32>
    %10 = arith.addf %8, %9 : vector<64x32xf32>
    %11 = vector.shape_cast %0 : vector<8x32xf32> to vector<8x1x32xf32>
    %12 = vector.shape_cast %10 : vector<64x32xf32> to vector<8x8x32xf32>
    %13 = vector.broadcast %11 : vector<8x1x32xf32> to vector<8x8x32xf32>
    %14 = arith.addf %13, %12 : vector<8x8x32xf32>
    %15 = math.tanh %14 : vector<8x8x32xf32>
    %16 = vector.shape_cast %3 : vector<1x32xf32> to vector<1x1x32xf32>
    %17 = vector.broadcast %16 : vector<1x1x32xf32> to vector<8x8x32xf32>
    %18 = arith.mulf %15, %17 : vector<8x8x32xf32>
    %cst_13 = arith.constant dense<0.000000e+00> : vector<8x8xf32>
    %19 = vector.multi_reduction <add>, %18, %cst_13 [2] : vector<8x8x32xf32> to vector<8x8xf32>
    %c0_14 = arith.constant 0 : index
    %c0_15 = arith.constant 0 : index
    %20 = vector.load %arg8[%c0_14, %c0_15] : memref<8x128xf32, #tpu.memory_space<vmem>>, vector<8x8xf32>
    tpu.vector_store %arg8[%c0_14, %c0_15], %19 {strides = array<i32>} : memref<8x128xf32, #tpu.memory_space<vmem>>, vector<8x8xf32>,
    %c0_16 = arith.constant 0 : index
    %c0_17 = arith.constant 0 : index
    %21 = vector.load %arg8[%c0_16, %c0_17] : memref<8x128xf32, #tpu.memory_space<vmem>>, vector<8x128xf32>
    %cst_18 = arith.constant dense<0xFF800000> : vector<8xf32>
    %22 = vector.multi_reduction <maximumf>, %21, %cst_18 [1] : vector<8x128xf32> to vector<8xf32>
    %23 = vector.shape_cast %22 : vector<8xf32> to vector<8x1xf32>
    %24 = vector.broadcast %23 : vector<8x1xf32> to vector<8x128xf32>
    %25 = arith.subf %21, %24 : vector<8x128xf32>
    %26 = math.exp %25 : vector<8x128xf32>
    %cst_19 = arith.constant dense<0.000000e+00> : vector<8xf32>
    %27 = vector.multi_reduction <add>, %26, %cst_19 [1] : vector<8x128xf32> to vector<8xf32>
    %28 = vector.shape_cast %27 : vector<8xf32> to vector<8x1xf32>
    %29 = vector.broadcast %28 : vector<8x1xf32> to vector<8x128xf32>
    %30 = arith.divf %26, %29 : vector<8x128xf32>
    %cst_20 = arith.constant 0.000000e+00 : f32
    %31 = vector.broadcast %cst_20 : f32 to vector<8x32xf32>
    %c0_21 = arith.constant 0 : index
    %c0_22 = arith.constant 0 : index
    %c0_23 = arith.constant 0 : index
    %32 = vector.load %arg2[%c0_21, %c0_22, %c0_23] : memref<8x8x32xf32, #tpu.memory_space<vmem>>, vector<8x8x32xf32>
    %33 = vector.extract_strided_slice %30 {offsets = [0, 0], sizes = [8, 8], strides = [1, 1]} : vector<8x128xf32> to vector<8x8xf32>
    %34 = vector.shape_cast %33 : vector<8x8xf32> to vector<8x8x1xf32>
    %35 = vector.broadcast %34 : vector<8x8x1xf32> to vector<8x8x32xf32>
    %36 = arith.mulf %35, %32 : vector<8x8x32xf32>
    %cst_24 = arith.constant dense<0.000000e+00> : vector<8x32xf32>
    %37 = vector.multi_reduction <add>, %36, %cst_24 [1] : vector<8x8x32xf32> to vector<8x32xf32>
    %38 = arith.addf %31, %37 : vector<8x32xf32>
    %c0_25 = arith.constant 0 : index
    %c0_26 = arith.constant 0 : index
    %39 = vector.load %arg6[%c0_25, %c0_26] : memref<8x32xf32, #tpu.memory_space<vmem>>, vector<8x32xf32>
    tpu.vector_store %arg6[%c0_25, %c0_26], %38 {strides = array<i32>} : memref<8x32xf32, #tpu.memory_space<vmem>>, vector<8x32xf32>,
    %c0_27 = arith.constant 0 : index
    %c0_28 = arith.constant 0 : index
    %40 = vector.load %arg7[%c0_27, %c0_28] : memref<8x128xf32, #tpu.memory_space<vmem>>, vector<8x128xf32>
    tpu.vector_store %arg7[%c0_27, %c0_28], %30 {strides = array<i32>} : memref<8x128xf32, #tpu.memory_space<vmem>>, vector<8x128xf32>,
    return
  }
  func.func @transform_0(%arg0: i32) -> (i32, i32) {
    %c0_i32 = arith.constant 0 : i32
    %c0_i32_0 = arith.constant 0 : i32
    return %arg0, %c0_i32 : i32, i32
  }
  func.func @transform_1(%arg0: i32) -> (i32, i32, i32) {
    %c0_i32 = arith.constant 0 : i32
    %c0_i32_0 = arith.constant 0 : i32
    %c0_i32_1 = arith.constant 0 : i32
    return %arg0, %c0_i32, %c0_i32_0 : i32, i32, i32
  }
  func.func @transform_2(%arg0: i32) -> (i32, i32) {
    %c0_i32 = arith.constant 0 : i32
    %c0_i32_0 = arith.constant 0 : i32
    %c0_i32_1 = arith.constant 0 : i32
    return %c0_i32, %c0_i32_0 : i32, i32
  }
  func.func @transform_3(%arg0: i32) -> (i32, i32) {
    %c0_i32 = arith.constant 0 : i32
    %c0_i32_0 = arith.constant 0 : i32
    %c0_i32_1 = arith.constant 0 : i32
    return %c0_i32, %c0_i32_0 : i32, i32
  }
  func.func @transform_4(%arg0: i32) -> (i32, i32) {
    %c0_i32 = arith.constant 0 : i32
    %c0_i32_0 = arith.constant 0 : i32
    %c0_i32_1 = arith.constant 0 : i32
    return %c0_i32, %c0_i32_0 : i32, i32
  }
  func.func @transform_5(%arg0: i32) -> (i32, i32) {
    %c0_i32 = arith.constant 0 : i32
    %c0_i32_0 = arith.constant 0 : i32
    return %arg0, %c0_i32 : i32, i32
  }
  func.func @transform_6(%arg0: i32) -> (i32, i32) {
    %c0_i32 = arith.constant 0 : i32
    %c0_i32_0 = arith.constant 0 : i32
    return %arg0, %c0_i32 : i32, i32
  }
}

</mosaic_0001>

<llo_original>
// kernel: tpu_custom_call.1
$region0: #{tpu_custom_call.1}
  #allocation0 [shape = 'u32[]', space=smem, size = 0x4, offset = 0x4, fixed_abs, tag = 'smem constant byte address 0x4 - core index']
  #allocation1 [shape = 'u32[144,128]{1,0:T(1,128)}', space=vmem, size = 0x12000, scoped, tag = 'internal scratch']
  #allocation2 [shape = 'f32[8,128]{1,0:T(8,128)}', space=vmem, size = 0x1000, scoped, tag = 'scratch operand']
  %s0 = inlined_call_operand.hbm [shape: f32[8,32], index: 0, kind: input, shape index: {}]
  %s1 = inlined_call_operand.hbm [shape: f32[8,8,32], index: 1, kind: input, shape index: {}]
  %s2 = inlined_call_operand.hbm [shape: f32[32,32], index: 2, kind: input, shape index: {}]
  %s3 = inlined_call_operand.vmem [shape: f32[1,32], index: 3, kind: input, shape index: {}]
  %s4 = inlined_call_operand.vmem [shape: f32[1,32], index: 4, kind: input, shape index: {}]
  %s5 = inlined_call_operand.hbm [shape: f32[8,32], index: 5, kind: output, shape index: {0}]
  %s6 = inlined_call_operand.hbm [shape: f32[8,128], index: 6, kind: output, shape index: {1}]
  %7 = xla_tuple %s5, %s6
  %s8 = sld [smem:[#allocation0]]
  $region50: #{tpu_custom_call.1} parent=0
    _
  %s10 = ssub.s32 1, %s8
  %s11 = scalar_select 0, %s10, %s8
  $region1: #{tpu_custom_call.1} parent=0
    #allocation3 [shape = 'u8[4096]{0}', space=vmem, size = 0x1000, scoped, tag = 'input window, operand 0, single buffered']
    #allocation4 [shape = 's32[1]{0}', space=sflag, size = 0x4, scoped, tag = 'scoped memory for tpu_custom_call.1']
    #allocation5 [shape = 's32[1]{0}', space=sflag, size = 0x4, scoped, tag = 'scoped memory for tpu_custom_call.1']
    #allocation6 [shape = 'u8[32768]{0}', space=vmem, size = 0x8000, scoped, tag = 'input window, operand 1, single buffered']
    #allocation7 [shape = 's32[1]{0}', space=sflag, size = 0x4, scoped, tag = 'scoped memory for tpu_custom_call.1']
    #allocation8 [shape = 'u8[16384]{0}', space=vmem, size = 0x4000, scoped, tag = 'input window, operand 2, single buffered']
    #allocation9 [shape = 'u8[4096]{0}', space=vmem, size = 0x1000, scoped, tag = 'output window, operand 0, single buffered']
    #allocation10 [shape = 'u8[4096]{0}', space=vmem, size = 0x1000, scoped, tag = 'output window, operand 1, single buffered']
    #allocation11 [shape = 's32[1]{0}', space=sflag, size = 0x4, scoped, tag = 'scoped memory for tpu_custom_call.1']
    %12 = vsyncpa [#allocation4], 0
    %13 = vsyncpa [#allocation7], 0
    %14 = vsyncpa [#allocation5], 0
    %15 = vsyncpa [#allocation11], 0
    // Predicated region
    $region2: #{tpu_custom_call.1} parent=1 // pred_check
      _
    $region3: #{tpu_custom_call.1} parent=1 // pred_check_branch
      %17 = sbr.rel (0) target = $region5
    $region4: #{tpu_custom_call.1} parent=1 // pred_region
      %s19 = ssub.s32 128, 128
      %20 = vsyncadd [#allocation4], %s19
      %s22 = sshll.u32 [#allocation3], 4
      %s23 = int_to_ptr.vmem [resolvable:$true] %s22
      %25 = dma.hbm_to_vmem [thread:$0]  %s0, 128, %s23, [#allocation4]
    $region5: #{tpu_custom_call.1} parent=1 // pred_fallthru
      _
    // Predicated region
    $region6: #{tpu_custom_call.1} parent=1 // pred_check
      _
    $region7: #{tpu_custom_call.1} parent=1 // pred_check_branch
      %27 = sbr.rel (0) target = $region9
    $region8: #{tpu_custom_call.1} parent=1 // pred_region
      %s29 = ssub.s32 1024, 1024
      %30 = vsyncadd [#allocation7], %s29
      %s31 = sshll.u32 [#allocation6], 4
      %s32 = int_to_ptr.vmem [resolvable:$true] %s31
      %37 = dma.hbm_to_vmem [thread:$0]  %s1, 1024, %s32, [#allocation7], 128, 128, 8
    $region9: #{tpu_custom_call.1} parent=1 // pred_fallthru
      _
    // Predicated region
    $region10: #{tpu_custom_call.1} parent=1 // pred_check
      _
    $region11: #{tpu_custom_call.1} parent=1 // pred_check_branch
      %39 = sbr.rel (0) target = $region13
    $region12: #{tpu_custom_call.1} parent=1 // pred_region
      %s41 = ssub.s32 512, 512
      %42 = vsyncadd [#allocation7], %s41
      %s43 = sshll.u32 [#allocation8], 4
      %s44 = int_to_ptr.vmem [resolvable:$true] %s43
      %49 = dma.hbm_to_vmem [thread:$0]  %s2, 512, %s44, [#allocation7], 128, 128, 8
    $region13: #{tpu_custom_call.1} parent=1 // pred_fallthru
      _
    // Predicated region
    $region14: #{tpu_custom_call.1} parent=1 // pred_check
      _
    $region15: #{tpu_custom_call.1} parent=1 // pred_check_branch
      %51 = sbr.rel (0) target = $region17
    $region16: #{tpu_custom_call.1} parent=1 // pred_region
      _
    $region17: #{tpu_custom_call.1} parent=1 // pred_fallthru
      _
    // Predicated region
    $region18: #{tpu_custom_call.1} parent=1 // pred_check
      _
    $region19: #{tpu_custom_call.1} parent=1 // pred_check_branch
      %53 = sbr.rel (0) target = $region21
    $region20: #{tpu_custom_call.1} parent=1 // pred_region
      _
    $region21: #{tpu_custom_call.1} parent=1 // pred_fallthru
      _
    // Predicated region
    $region22: #{tpu_custom_call.1} parent=1 // pred_check
      _
    $region23: #{tpu_custom_call.1} parent=1 // pred_check_branch
      %55 = sbr.rel (0) target = $region25
    $region24: #{tpu_custom_call.1} parent=1 // pred_region
      %56 = dma.done [#allocation4], 128
    $region25: #{tpu_custom_call.1} parent=1 // pred_fallthru
      _
    // Predicated region
    $region26: #{tpu_custom_call.1} parent=1 // pred_check
      _
    $region27: #{tpu_custom_call.1} parent=1 // pred_check_branch
      %58 = sbr.rel (0) target = $region29
    $region28: #{tpu_custom_call.1} parent=1 // pred_region
      %59 = dma.done [#allocation7], 1024
    $region29: #{tpu_custom_call.1} parent=1 // pred_fallthru
      _
    // Predicated region
    $region30: #{tpu_custom_call.1} parent=1 // pred_check
      _
    $region31: #{tpu_custom_call.1} parent=1 // pred_check_branch
      %61 = sbr.rel (0) target = $region33
    $region32: #{tpu_custom_call.1} parent=1 // pred_region
      %62 = dma.done [#allocation7], 512
    $region33: #{tpu_custom_call.1} parent=1 // pred_fallthru
      _
    %v63 = vld [vmem:[#allocation3] sm:$0xff]
    %v64 = vld [vmem:[#allocation8] sm:$0xff]
    %v65 = vld [vmem:[#allocation8 + $0x8] sm:$0xff]
    %v66 = vld [vmem:[#allocation8 + $0x10] sm:$0xff]
    %v67 = vld [vmem:[#allocation8 + $0x18] sm:$0xff]
    %v68 = vld [vmem:[%s3] sm:$0x1]
    %v69 = vld [vmem:[%s4] sm:$0x1]
    %70 = vst [vmem:[#allocation2] sm:$0xff] -inf
    %v71 = vld [vmem:[#allocation6] sm:$0xff]
    %v72 = vld [vmem:[#allocation6 + $0x8] sm:$0xff]
    %v73 = vld [vmem:[#allocation6 + $0x10] sm:$0xff]
    %v74 = vld [vmem:[#allocation6 + $0x18] sm:$0xff]
    %v75 = vld [vmem:[#allocation6 + $0x20] sm:$0xff]
    %v76 = vld [vmem:[#allocation6 + $0x28] sm:$0xff]
    %v77 = vld [vmem:[#allocation6 + $0x30] sm:$0xff]
    %v78 = vld [vmem:[#allocation6 + $0x38] sm:$0xff]
    %v80 = vlaneseq
    %v81 = vshrl.u32 %v80, 7
    %v82 = vsub.s32 0, %v81
    %v83 = vrot.slane %v68, %v82
    %vm85 = vcmask 261120
    %v87 = vsel %vm85, %v71, 0
    %v90 = vsel %vm85, %v72, 0
    %v93 = vsel %vm85, %v73, 0
    %v96 = vsel %vm85, %v74, 0
    %v99 = vsel %vm85, %v75, 0
    %v102 = vsel %vm85, %v76, 0
    %v105 = vsel %vm85, %v77, 0
    %v108 = vsel %vm85, %v78, 0
    %110 = vmatprep.subr.mxu0 0.0
    %111 = vmatpush1.msra.mxu0 %v64
    %112 = vmatprep.subr.mxu0 0.0
    %113 = vmatpush1.msra.mxu0 %v65
    %114 = vmatprep.subr.mxu0 0.0
    %115 = vmatpush1.msra.mxu0 %v66
    %116 = vmatprep.subr.mxu0 0.0
    %117 = vmatpush1.msra.mxu0 %v67
    %118 = vmatprep.subr.mxu0 0.0
    %119 = vmatpush1.msra.mxu0 0.0
    %120 = vmatprep.subr.mxu0 0.0
    %121 = vmatpush1.msra.mxu0 0.0
    %122 = vmatprep.subr.mxu0 0.0
    %123 = vmatpush1.msra.mxu0 0.0
    %124 = vmatprep.subr.mxu0 0.0
    %125 = vmatpush1.msra.mxu0 0.0
    %126 = vmatprep.subr.mxu0 0.0
    %127 = vmatpush1.msra.mxu0 0.0
    %128 = vmatprep.subr.mxu0 0.0
    %129 = vmatpush1.msra.mxu0 0.0
    %130 = vmatprep.subr.mxu0 0.0
    %131 = vmatpush1.msra.mxu0 0.0
    %132 = vmatprep.subr.mxu0 0.0
    %133 = vmatpush1.msra.mxu0 0.0
    %134 = vmatprep.subr.mxu0 0.0
    %135 = vmatpush1.msra.mxu0 0.0
    %136 = vmatprep.subr.mxu0 0.0
    %137 = vmatpush1.msra.mxu0 0.0
    %138 = vmatprep.subr.mxu0 0.0
    %139 = vmatpush1.msra.mxu0 0.0
    %140 = vmatprep.subr.mxu0 0.0
    %141 = vmatpush1.msra.mxu0 0.0
    %142 = vmatprep.subr.mxu0 0.0
    %143 = vmatpush1.msra.mxu0 0.0
    %144 = vmatprep.subr.mxu0 0.0
    %145 = vmatpush1.msra.mxu0 0.0
    %146 = vmatprep.subr.mxu0 0.0
    %147 = vmatpush1.msra.mxu0 0.0
    %148 = vmatprep.subr.mxu0 0.0
    %149 = vmatpush1.msra.mxu0 0.0
    %150 = vmatprep.subr.mxu0 0.0
    %151 = vmatpush1.msra.mxu0 0.0
    %152 = vmatprep.subr.mxu0 0.0
    %153 = vmatpush1.msra.mxu0 0.0
    %154 = vmatprep.subr.mxu0 0.0
    %155 = vmatpush1.msra.mxu0 0.0
    %156 = vmatprep.subr.mxu0 0.0
    %157 = vmatpush1.msra.mxu0 0.0
    %158 = vmatprep.subr.mxu0 0.0
    %159 = vmatpush1.msra.mxu0 0.0
    %160 = vmatprep.subr.mxu0 0.0
    %161 = vmatpush1.msra.mxu0 0.0
    %162 = vmatprep.subr.mxu0 0.0
    %163 = vmatpush1.msra.mxu0 0.0
    %164 = vmatprep.subr.mxu0 0.0
    %165 = vmatpush1.msra.mxu0 0.0
    %166 = vmatprep.subr.mxu0 0.0
    %167 = vmatpush1.msra.mxu0 0.0
    %168 = vmatprep.subr.mxu0 0.0
    %169 = vmatpush1.msra.mxu0 0.0
    %170 = vmatprep.subr.mxu0 0.0
    %171 = vmatpush1.msra.mxu0 0.0
    %172 = vmatprep.subr.mxu0 0.0
    %173 = vmatpush1.msra.mxu0 0.0
    %174 = vmatprep.mubr.f32.mxu0 0.0
    %175 = vmatmul.mubr.f32.gmra.mrb[0].mxu0 %v87
    %v176 = vpop.f32.mrb[0].mxu0
    %v177 = vadd.f32 %v83, %v176
    %v178 = vpop.f32.mrb[0].mxu0
    %179 = vmatprep.mubr.f32.mxu0 0.0
    %180 = vmatmul.mubr.f32.gmra.mrb[0].mxu0 %v90
    %v181 = vpop.f32.mrb[0].mxu0
    %v182 = vadd.f32 %v83, %v181
    %v183 = vpop.f32.mrb[0].mxu0
    %184 = vmatprep.mubr.f32.mxu0 0.0
    %185 = vmatmul.mubr.f32.gmra.mrb[0].mxu0 %v93
    %v186 = vpop.f32.mrb[0].mxu0
    %v187 = vadd.f32 %v83, %v186
    %v188 = vpop.f32.mrb[0].mxu0
    %189 = vmatprep.mubr.f32.mxu0 0.0
    %190 = vmatmul.mubr.f32.gmra.mrb[0].mxu0 %v96
    %v191 = vpop.f32.mrb[0].mxu0
    %v192 = vadd.f32 %v83, %v191
    %v193 = vpop.f32.mrb[0].mxu0
    %194 = vmatprep.mubr.f32.mxu0 0.0
    %195 = vmatmul.mubr.f32.gmra.mrb[0].mxu0 %v99
    %v196 = vpop.f32.mrb[0].mxu0
    %v197 = vadd.f32 %v83, %v196
    %v198 = vpop.f32.mrb[0].mxu0
    %199 = vmatprep.mubr.f32.mxu0 0.0
    %200 = vmatmul.mubr.f32.gmra.mrb[0].mxu0 %v102
    %v201 = vpop.f32.mrb[0].mxu0
    %v202 = vadd.f32 %v83, %v201
    %v203 = vpop.f32.mrb[0].mxu0
    %204 = vmatprep.mubr.f32.mxu0 0.0
    %205 = vmatmul.mubr.f32.gmra.mrb[0].mxu0 %v105
    %v206 = vpop.f32.mrb[0].mxu0
    %v207 = vadd.f32 %v83, %v206
    %v208 = vpop.f32.mrb[0].mxu0
    %209 = vmatprep.mubr.f32.mxu0 0.0
    %210 = vmatmul.mubr.f32.gmra.mrb[0].mxu0 %v108
    %v211 = vpop.f32.mrb[0].mxu0
    %v212 = vadd.f32 %v83, %v211
    %v213 = vpop.f32.mrb[0].mxu0
    %214 = vdwg.mxu0
    %v216 = vcombine.high %v63, %v63
    %v218 = vunpack.c.l.s4 1966171168
    %v219 = vunpack.c.0.s8 %v218
    %v220 = vlaneseq
    %v221 = vshrl.u32 %v220, 7
    %v222 = vsub.s32 %v219, %v221
    %v223 = vrot.slane %v63, %v222
    %v225 = vunpack.c.l.s4 1966171168
    %v226 = vunpack.c.0.s8 %v225
    %v227 = vlaneseq
    %v228 = vshrl.u32 %v227, 7
    %v229 = vsub.s32 %v226, %v228
    %v230 = vrot.slane %v216, %v229
    %v231 = vcombine.high %v223, %v223
    %v232 = vcombine.high %v230, %v230
    %v234 = vunpack.c.l.s4 1966171168
    %v235 = vunpack.c.0.s8 %v234
    %v236 = vlaneseq
    %v237 = vshrl.u32 %v236, 7
    %v238 = vsub.s32 %v235, %v237
    %v239 = vrot.slane %v223, %v238
    %v241 = vunpack.c.l.s4 1966171168
    %v242 = vunpack.c.0.s8 %v241
    %v243 = vlaneseq
    %v244 = vshrl.u32 %v243, 7
    %v245 = vsub.s32 %v242, %v244
    %v246 = vrot.slane %v230, %v245
    %v248 = vunpack.c.l.s4 1966171168
    %v249 = vunpack.c.0.s8 %v248
    %v250 = vlaneseq
    %v251 = vshrl.u32 %v250, 7
    %v252 = vsub.s32 %v249, %v251
    %v253 = vrot.slane %v231, %v252
    %v255 = vunpack.c.l.s4 1966171168
    %v256 = vunpack.c.0.s8 %v255
    %v257 = vlaneseq
    %v258 = vshrl.u32 %v257, 7
    %v259 = vsub.s32 %v256, %v258
    %v260 = vrot.slane %v232, %v259
    %v261 = vcombine.high %v239, %v239
    %v262 = vcombine.high %v246, %v246
    %v263 = vcombine.high %v253, %v253
    %v264 = vcombine.high %v260, %v260
    %v265 = vlaneseq
    %v266 = vshrl.u32 %v265, 7
    %v267 = vsub.s32 0, %v266
    %v268 = vrot.slane %v239, %v267
    %v269 = vlaneseq
    %v270 = vshrl.u32 %v269, 7
    %v271 = vsub.s32 0, %v270
    %v272 = vrot.slane %v253, %v271
    %v273 = vlaneseq
    %v274 = vshrl.u32 %v273, 7
    %v275 = vsub.s32 0, %v274
    %v276 = vrot.slane %v261, %v275
    %v277 = vlaneseq
    %v278 = vshrl.u32 %v277, 7
    %v279 = vsub.s32 0, %v278
    %v280 = vrot.slane %v263, %v279
    %v281 = vlaneseq
    %v282 = vshrl.u32 %v281, 7
    %v283 = vsub.s32 0, %v282
    %v284 = vrot.slane %v246, %v283
    %v285 = vlaneseq
    %v286 = vshrl.u32 %v285, 7
    %v287 = vsub.s32 0, %v286
    %v288 = vrot.slane %v260, %v287
    %v289 = vlaneseq
    %v290 = vshrl.u32 %v289, 7
    %v291 = vsub.s32 0, %v290
    %v292 = vrot.slane %v262, %v291
    %v293 = vlaneseq
    %v294 = vshrl.u32 %v293, 7
    %v295 = vsub.s32 0, %v294
    %v296 = vrot.slane %v264, %v295
    %v305 = vadd.f32 %v268, %v177
    %v306 = vadd.f32 %v272, %v182
    %v307 = vadd.f32 %v276, %v187
    %v308 = vadd.f32 %v280, %v192
    %v309 = vadd.f32 %v284, %v197
    %v310 = vadd.f32 %v288, %v202
    %v311 = vadd.f32 %v292, %v207
    %v312 = vadd.f32 %v296, %v212
    %v313 = vtanh.pop %v305
    %v314 = vtanh.pop %v306
    %v315 = vtanh.pop %v307
    %v316 = vtanh.pop %v308
    %v317 = vtanh.pop %v309
    %v318 = vtanh.pop %v310
    %v319 = vtanh.pop %v311
    %v320 = vtanh.pop %v312
    %v322 = vlaneseq
    %v323 = vshrl.u32 %v322, 7
    %v324 = vsub.s32 0, %v323
    %v325 = vrot.slane %v69, %v324
    %v327 = vmul.f32 %v313, %v325
    %v328 = vmul.f32 %v314, %v325
    %v329 = vmul.f32 %v315, %v325
    %v330 = vmul.f32 %v316, %v325
    %v331 = vmul.f32 %v317, %v325
    %v332 = vmul.f32 %v318, %v325
    %v333 = vmul.f32 %v319, %v325
    %v334 = vmul.f32 %v320, %v325
    %v335 = vsel %vm85, %v327, 0.0
    %336 = vadd.xlane.f32.xlu0 %v335
    %v337 = vpop.xlane.xlu0 %336
    %v338 = vsel %vm85, %v328, 0.0
    %339 = vadd.xlane.f32.xlu0 %v338
    %v340 = vpop.xlane.xlu0 %339
    %v341 = vsel %vm85, %v329, 0.0
    %342 = vadd.xlane.f32.xlu0 %v341
    %v343 = vpop.xlane.xlu0 %342
    %v344 = vsel %vm85, %v330, 0.0
    %345 = vadd.xlane.f32.xlu0 %v344
    %v346 = vpop.xlane.xlu0 %345
    %v347 = vsel %vm85, %v331, 0.0
    %348 = vadd.xlane.f32.xlu0 %v347
    %v349 = vpop.xlane.xlu0 %348
    %v350 = vsel %vm85, %v332, 0.0
    %351 = vadd.xlane.f32.xlu0 %v350
    %v352 = vpop.xlane.xlu0 %351
    %v353 = vsel %vm85, %v333, 0.0
    %354 = vadd.xlane.f32.xlu0 %v353
    %v355 = vpop.xlane.xlu0 %354
    %v356 = vsel %vm85, %v334, 0.0
    %357 = vadd.xlane.f32.xlu0 %v356
    %v358 = vpop.xlane.xlu0 %357
    %v367 = vlaneseq
    %v368 = vand.u32 %v367, 127
    %v369 = vlaneseq
    %v370 = vshrl.u32 %v369, 7
    %v371 = vsub.s32 %v368, %v370
    %v372 = vrot.slane %v337, %v371
    %v373 = vlaneseq
    %v374 = vshrl.u32 %v373, 7
    %v375 = vsub.s32 %v368, %v374
    %v376 = vrot.slane %v340, %v375
    %v377 = vlaneseq
    %v378 = vshrl.u32 %v377, 7
    %v379 = vsub.s32 %v368, %v378
    %v380 = vrot.slane %v343, %v379
    %v381 = vlaneseq
    %v382 = vshrl.u32 %v381, 7
    %v383 = vsub.s32 %v368, %v382
    %v384 = vrot.slane %v346, %v383
    %v385 = vlaneseq
    %v386 = vshrl.u32 %v385, 7
    %v387 = vsub.s32 %v368, %v386
    %v388 = vrot.slane %v349, %v387
    %v389 = vlaneseq
    %v390 = vshrl.u32 %v389, 7
    %v391 = vsub.s32 %v368, %v390
    %v392 = vrot.slane %v352, %v391
    %v393 = vlaneseq
    %v394 = vshrl.u32 %v393, 7
    %v395 = vsub.s32 %v368, %v394
    %v396 = vrot.slane %v355, %v395
    %v397 = vlaneseq
    %v398 = vshrl.u32 %v397, 7
    %v399 = vsub.s32 %v368, %v398
    %v400 = vrot.slane %v358, %v399
    %vm401 = vcmask 1041409
    %v402 = vsel %vm401, %v376, %v372
    %vm403 = vcmask 1042434
    %v404 = vsel %vm403, %v380, %v402
    %vm405 = vcmask 1043459
    %v406 = vsel %vm405, %v384, %v404
    %vm407 = vcmask 1044484
    %v408 = vsel %vm407, %v388, %v406
    %vm409 = vcmask 1045509
    %v410 = vsel %vm409, %v392, %v408
    %vm411 = vcmask 1046534
    %v412 = vsel %vm411, %v396, %v410
    %vm413 = vcmask 1047559
    %v414 = vsel %vm413, %v400, %v412
    %vm416 = vcmask 64512
    %417 = vst.msk [vmem:[#allocation2] sm:$0xff] %vm416, %v414
    %v418 = vld [vmem:[#allocation2] sm:$0xff]
    %419 = vmax.xlane.f32.xlu0 %v418
    %v420 = vpop.xlane.xlu0 %419
    %v421 = vsub.f32 %v418, %v420
    %v422 = vmul.f32 %v421, 1.442695
    %v423 = vpow.pop %v422
    %424 = vadd.xlane.f32.xlu0 %v423
    %v425 = vpop.xlane.xlu0 %424
    %v426 = vrcp.pop %v425
    %v427 = vmul.f32 %v423, %v426
    %v428 = vld [vmem:[#allocation6] sm:$0xff]
    %v429 = vld [vmem:[#allocation6 + $0x8] sm:$0xff]
    %v430 = vld [vmem:[#allocation6 + $0x10] sm:$0xff]
    %v431 = vld [vmem:[#allocation6 + $0x18] sm:$0xff]
    %v432 = vld [vmem:[#allocation6 + $0x20] sm:$0xff]
    %v433 = vld [vmem:[#allocation6 + $0x28] sm:$0xff]
    %v434 = vld [vmem:[#allocation6 + $0x30] sm:$0xff]
    %v435 = vld [vmem:[#allocation6 + $0x38] sm:$0xff]
    %v436 = vlaneseq
    %v437 = vshrl.u32 %v436, 7
    %v438 = vsub.s32 0, %v437
    %v439 = vrot.slane %v427, %v438
    %441 = vbcast.lane.b32.xlu0 %v439, 256
    %v442 = vpop.permute.xlu0 %441
    %v443 = vlaneseq
    %v444 = vshrl.u32 %v443, 7
    %v445 = vsub.s32 1, %v444
    %v446 = vrot.slane %v427, %v445
    %448 = vbcast.lane.b32.xlu0 %v446, 256
    %v449 = vpop.permute.xlu0 %448
    %v450 = vlaneseq
    %v451 = vshrl.u32 %v450, 7
    %v452 = vsub.s32 2, %v451
    %v453 = vrot.slane %v427, %v452
    %455 = vbcast.lane.b32.xlu0 %v453, 256
    %v456 = vpop.permute.xlu0 %455
    %v457 = vlaneseq
    %v458 = vshrl.u32 %v457, 7
    %v459 = vsub.s32 3, %v458
    %v460 = vrot.slane %v427, %v459
    %462 = vbcast.lane.b32.xlu0 %v460, 256
    %v463 = vpop.permute.xlu0 %462
    %v464 = vlaneseq
    %v465 = vshrl.u32 %v464, 7
    %v466 = vsub.s32 4, %v465
    %v467 = vrot.slane %v427, %v466
    %469 = vbcast.lane.b32.xlu0 %v467, 256
    %v470 = vpop.permute.xlu0 %469
    %v471 = vlaneseq
    %v472 = vshrl.u32 %v471, 7
    %v473 = vsub.s32 5, %v472
    %v474 = vrot.slane %v427, %v473
    %476 = vbcast.lane.b32.xlu0 %v474, 256
    %v477 = vpop.permute.xlu0 %476
    %v478 = vlaneseq
    %v479 = vshrl.u32 %v478, 7
    %v480 = vsub.s32 6, %v479
    %v481 = vrot.slane %v427, %v480
    %483 = vbcast.lane.b32.xlu0 %v481, 256
    %v484 = vpop.permute.xlu0 %483
    %v485 = vlaneseq
    %v486 = vshrl.u32 %v485, 7
    %v487 = vsub.s32 7, %v486
    %v488 = vrot.slane %v427, %v487
    %490 = vbcast.lane.b32.xlu0 %v488, 256
    %v491 = vpop.permute.xlu0 %490
    %v492 = vmul.f32 %v442, %v428
    %v493 = vmul.f32 %v449, %v429
    %v494 = vmul.f32 %v456, %v430
    %v495 = vmul.f32 %v463, %v431
    %v496 = vmul.f32 %v470, %v432
    %v497 = vmul.f32 %v477, %v433
    %v498 = vmul.f32 %v484, %v434
    %v499 = vmul.f32 %v491, %v435
    %v500 = vsel %vm85, %v492, 0.0
    %v501 = vrot.slane %v500, 4
    %v502 = vadd.f32 %v500, %v501
    %v503 = vrot.slane %v502, 2
    %v504 = vadd.f32 %v502, %v503
    %v505 = vrot.slane %v504, 1
    %v506 = vadd.f32 %v504, %v505
    %v507 = vsel %vm85, %v493, 0.0
    %v508 = vrot.slane %v507, 4
    %v509 = vadd.f32 %v507, %v508
    %v510 = vrot.slane %v509, 2
    %v511 = vadd.f32 %v509, %v510
    %v512 = vrot.slane %v511, 1
    %v513 = vadd.f32 %v511, %v512
    %v514 = vsel %vm85, %v494, 0.0
    %v515 = vrot.slane %v514, 4
    %v516 = vadd.f32 %v514, %v515
    %v517 = vrot.slane %v516, 2
    %v518 = vadd.f32 %v516, %v517
    %v519 = vrot.slane %v518, 1
    %v520 = vadd.f32 %v518, %v519
    %v521 = vsel %vm85, %v495, 0.0
    %v522 = vrot.slane %v521, 4
    %v523 = vadd.f32 %v521, %v522
    %v524 = vrot.slane %v523, 2
    %v525 = vadd.f32 %v523, %v524
    %v526 = vrot.slane %v525, 1
    %v527 = vadd.f32 %v525, %v526
    %v528 = vsel %vm85, %v496, 0.0
    %v529 = vrot.slane %v528, 4
    %v530 = vadd.f32 %v528, %v529
    %v531 = vrot.slane %v530, 2
    %v532 = vadd.f32 %v530, %v531
    %v533 = vrot.slane %v532, 1
    %v534 = vadd.f32 %v532, %v533
    %v535 = vsel %vm85, %v497, 0.0
    %v536 = vrot.slane %v535, 4
    %v537 = vadd.f32 %v535, %v536
    %v538 = vrot.slane %v537, 2
    %v539 = vadd.f32 %v537, %v538
    %v540 = vrot.slane %v539, 1
    %v541 = vadd.f32 %v539, %v540
    %v542 = vsel %vm85, %v498, 0.0
    %v543 = vrot.slane %v542, 4
    %v544 = vadd.f32 %v542, %v543
    %v545 = vrot.slane %v544, 2
    %v546 = vadd.f32 %v544, %v545
    %v547 = vrot.slane %v546, 1
    %v548 = vadd.f32 %v546, %v547
    %v549 = vsel %vm85, %v499, 0.0
    %v550 = vrot.slane %v549, 4
    %v551 = vadd.f32 %v549, %v550
    %v552 = vrot.slane %v551, 2
    %v553 = vadd.f32 %v551, %v552
    %v554 = vrot.slane %v553, 1
    %v555 = vadd.f32 %v553, %v554
    %v556 = vadd.f32 %v506, 0.0
    %v557 = vadd.f32 %v513, 0.0
    %v558 = vadd.f32 %v520, 0.0
    %v559 = vadd.f32 %v527, 0.0
    %v560 = vadd.f32 %v534, 0.0
    %v561 = vadd.f32 %v541, 0.0
    %v562 = vadd.f32 %v548, 0.0
    %v563 = vadd.f32 %v555, 0.0
    %v572 = vsel %vm401, %v557, %v556
    %v573 = vsel %vm403, %v558, %v572
    %v574 = vsel %vm405, %v559, %v573
    %v575 = vsel %vm407, %v560, %v574
    %v576 = vsel %vm409, %v561, %v575
    %v577 = vsel %vm411, %v562, %v576
    %v578 = vsel %vm413, %v563, %v577
    %580 = vst.msk [vmem:[#allocation9] sm:$0xff] %vm85, %v578
    %581 = vst [vmem:[#allocation10] sm:$0xff] %v427
    // Predicated region
    $region34: #{tpu_custom_call.1} parent=1 // pred_check
      _
    $region35: #{tpu_custom_call.1} parent=1 // pred_check_branch
      %583 = sbr.rel (0) target = $region37
    $region36: #{tpu_custom_call.1} parent=1 // pred_region
      %s585 = ssub.s32 128, 128
      %586 = vsyncadd [#allocation5], %s585
      %s588 = sshll.u32 [#allocation9], 4
      %s589 = int_to_ptr.vmem [resolvable:$true] %s588
      %591 = dma.vmem_to_hbm [thread:$0]  %s589, 128, %s5, [#allocation5]
    $region37: #{tpu_custom_call.1} parent=1 // pred_fallthru
      _
    // Predicated region
    $region38: #{tpu_custom_call.1} parent=1 // pred_check
      _
    $region39: #{tpu_custom_call.1} parent=1 // pred_check_branch
      %593 = sbr.rel (0) target = $region41
    $region40: #{tpu_custom_call.1} parent=1 // pred_region
      %s595 = ssub.s32 128, 128
      %596 = vsyncadd [#allocation11], %s595
      %s598 = sshll.u32 [#allocation10], 4
      %s599 = int_to_ptr.vmem [resolvable:$true] %s598
      %601 = dma.vmem_to_hbm [thread:$0]  %s599, 128, %s6, [#allocation11]
    $region41: #{tpu_custom_call.1} parent=1 // pred_fallthru
      _
    // Predicated region
    $region42: #{tpu_custom_call.1} parent=1 // pred_check
      _
    $region43: #{tpu_custom_call.1} parent=1 // pred_check_branch
      %603 = sbr.rel (0) target = $region45
    $region44: #{tpu_custom_call.1} parent=1 // pred_region
      %604 = dma.done [#allocation5], 128
    $region45: #{tpu_custom_call.1} parent=1 // pred_fallthru
      _
    // Predicated region
    $region46: #{tpu_custom_call.1} parent=1 // pred_check
      _
    $region47: #{tpu_custom_call.1} parent=1 // pred_check_branch
      %606 = sbr.rel (0) target = $region49
    $region48: #{tpu_custom_call.1} parent=1 // pred_region
      %607 = dma.done [#allocation11], 128
    $region49: #{tpu_custom_call.1} parent=1 // pred_fallthru
      _
    %608 = vsyncpa [#allocation4], 1
    %609 = vsyncpa [#allocation7], 1
    %610 = vsyncpa [#allocation5], 1
    %611 = vsyncpa [#allocation11], 1

</llo_original>
